<compile_context>
chip_gen: v5e
topology: v5e:2x2
jax: 0.10.0
libtpu: 0.0.40
codegen_flags: <defaults>
</compile_context>

<pallas_src>
import math

import jax
import jax.numpy as jnp
from jax.experimental import pallas as pl
from jax.experimental.pallas import tpu as pltpu


# -----------------------------------------------------------------------------
# Parameter / buffer setup (mirrors PyTorch PositionalEncoding.__init__)
# -----------------------------------------------------------------------------
def make_pe_table(d_model, max_len=5000, pe_scale_factor=0.1, dtype=jnp.float32):
    position = jnp.arange(0, max_len, dtype=jnp.float32)[:, None]          # (L, 1)
    div_term = jnp.exp(
        jnp.arange(0, d_model, 2, dtype=jnp.float32) * -(math.log(10000.0) / d_model)
    )                                                                       # (D/2,)
    pe = jnp.zeros((max_len, d_model), dtype=jnp.float32)
    pe = pe.at[:, 0::2].set(jnp.sin(position * div_term) * pe_scale_factor)
    pe = pe.at[:, 1::2].set(jnp.cos(position * div_term) * pe_scale_factor)
    return pe.astype(dtype)


# -----------------------------------------------------------------------------
# Kernels (pure elementwise -> HBM-bandwidth bound; VPU work hides under DMA)
# -----------------------------------------------------------------------------
def _pe_add_kernel(x_ref, pe_ref, o_ref):
    # x block: (TB, TS, D); pe block: (TS, D) broadcast over the batch tile.
    o_ref[...] = (x_ref[...] + pe_ref[...][None, :, :]).astype(o_ref.dtype)


def _pe_add_dropout_kernel(x_ref, pe_ref, m_ref, o_ref):
    # m_ref is a pre-scaled keep mask with values in {0, 1/(1-p)} in x's dtype,
    # matching torch.nn.Dropout training semantics.
    y = x_ref[...] + pe_ref[...][None, :, :]
    o_ref[...] = (y * m_ref[...]).astype(o_ref.dtype)


# -----------------------------------------------------------------------------
# Tiling heuristic: ~1 MiB per x block.
#   - last block dim == full D (lane-dense whenever d_model is a multiple of
#     128, e.g. the real model's d_model=2048)
#   - sequence tile is a multiple of 8 (sublane) or the full S
#   - if S*D is small, merge several batch rows per block so per-step overhead
#     (~0.35 us) is amortized; keeps worst-case VMEM (2x in + 2x out + mask +
#     pe) well under the scoped limits on v5e/v6e/v7x.
# -----------------------------------------------------------------------------
def _choose_tiles(B, S, D, dtype, target_bytes=1 << 20):
    row_bytes = max(1, D * jnp.dtype(dtype).itemsize)
    target_rows = max(1, target_bytes // row_bytes)
    if target_rows >= S:
        ts = S
        tb = int(max(1, min(B, target_rows // max(S, 1))))
    else:
        tb = 1
        ts = int(min(S, max(8, (target_rows // 8) * 8)))
    return tb, ts


# -----------------------------------------------------------------------------
# Wrapper (== PositionalEncoding.forward)
# -----------------------------------------------------------------------------
def positional_encoding(x, pe_table, *, dropout_p=0.1, training=False, rng=None):
    """x: (B, S, D) float array. pe_table: (max_len, D)."""
    B, S, D = x.shape
    pe_slice = pe_table[:S].astype(x.dtype)            # pe[:, :x.size(1)] slice (glue)

    tb, ts = _choose_tiles(B, S, D, x.dtype)
    grid = (pl.cdiv(B, tb), pl.cdiv(S, ts))

    x_spec = pl.BlockSpec((tb, ts, D), lambda b, s: (b, s, 0))
    pe_spec = pl.BlockSpec((ts, D), lambda b, s: (s, 0))
    out_spec = pl.BlockSpec((tb, ts, D), lambda b, s: (b, s, 0))
    out_shape = jax.ShapeDtypeStruct((B, S, D), x.dtype)
    cparams = pltpu.CompilerParams(dimension_semantics=("parallel", "parallel"))

    if (not training) or dropout_p == 0.0:
        # nn.Dropout is the identity in eval mode.
        return pl.pallas_call(
            _pe_add_kernel,
            out_shape=out_shape,
            grid=grid,
            in_specs=[x_spec, pe_spec],
            out_specs=out_spec,
            compiler_params=cparams,
        )(x, pe_slice)

    # Training mode: generate the keep mask in plain JAX (glue), fuse the
    # scale-and-apply into the kernel.  Blocks stay fully independent.
    if rng is None:
        rng = jax.random.PRNGKey(0)
    keep = jax.random.bernoulli(rng, 1.0 - dropout_p, shape=x.shape)
    scale = jnp.asarray(1.0 / (1.0 - dropout_p), dtype=x.dtype)
    mask = keep.astype(x.dtype) * scale                 # {0, 1/(1-p)}

    return pl.pallas_call(
        _pe_add_dropout_kernel,
        out_shape=out_shape,
        grid=grid,
        in_specs=[x_spec, pe_spec, x_spec],             # mask tiled like x
        out_specs=out_spec,
        compiler_params=cparams,
    )(x, pe_slice, mask)


# -----------------------------------------------------------------------------
# Demo / correctness check
# -----------------------------------------------------------------------------
if __name__ == "__main__":
    # --- small f32 case (eval + train paths) -------------------------------
    B, S, D = 2, 8, 32
    max_len = int(S * 1.5)          # matches max_len = int(seq_len * 1.5)
    dropout_p = 0.1

    key = jax.random.PRNGKey(0)
    x = jax.random.normal(key, (B, S, D), dtype=jnp.float32)
    pe_table = make_pe_table(D, max_len=max_len, pe_scale_factor=0.1)

    out = positional_encoding(x, pe_table, dropout_p=dropout_p, training=False)
    out = jax.block_until_ready(out)
    ref = x + pe_table[:S][None, :, :]
    assert out.shape == (B, S, D) and out.dtype == x.dtype
    assert jnp.allclose(out, ref, atol=1e-6, rtol=1e-6), "eval-path mismatch"

    # Training path (dropout): mask is generated from the same rng in the
    # wrapper, so we can reproduce the reference exactly.
    rng = jax.random.PRNGKey(42)
    out_train = positional_encoding(
        x, pe_table, dropout_p=dropout_p, training=True, rng=rng
    )
    out_train = jax.block_until_ready(out_train)
    keep = jax.random.bernoulli(rng, 1.0 - dropout_p, shape=x.shape)
    scale = jnp.asarray(1.0 / (1.0 - dropout_p), dtype=x.dtype)
    ref_train = jnp.where(keep, (x + pe_table[:S][None, :, :]) * scale, 0.0)
    assert jnp.allclose(out_train, ref_train, atol=1e-6, rtol=1e-6), "train-path mismatch"

    # --- bf16 case (exercises the dtype-cast fix + lane-dense last dim) ----
    B2, S2, D2 = 3, 8, 256
    x_bf16 = jax.random.normal(jax.random.PRNGKey(1), (B2, S2, D2)).astype(jnp.bfloat16)
    pe_table2 = make_pe_table(D2, max_len=int(S2 * 1.5), pe_scale_factor=0.1)
    out_bf16 = positional_encoding(x_bf16, pe_table2, dropout_p=dropout_p, training=False)
    out_bf16 = jax.block_until_ready(out_bf16)
    ref_bf16 = x_bf16 + pe_table2[:S2].astype(jnp.bfloat16)[None, :, :]
    assert out_bf16.dtype == jnp.bfloat16
    assert jnp.allclose(
        out_bf16.astype(jnp.float32), ref_bf16.astype(jnp.float32), atol=1e-2, rtol=1e-2
    ), "bf16 mismatch"

    print("KERNEL_OK")
</pallas_src>

<mosaic_0001>
module attributes {stable_mosaic.version = 11 : i64} {
  func.func @_pe_add_kernel(%arg0: i32, %arg1: i32, %arg2: memref<2x8x32xf32, #tpu.memory_space<vmem>>, %arg3: memref<8x32xf32, #tpu.memory_space<vmem>>, %arg4: memref<2x8x32xf32, #tpu.memory_space<vmem>>) attributes {dimension_semantics = [#tpu.dimension_semantics<parallel>, #tpu.dimension_semantics<parallel>], iteration_bounds = array<i64: 1, 1>, scalar_prefetch = 0 : i64, scratch_operands = 0 : i64, tpu.core_type = #tpu.core_type<tc>, window_params = [{transform_indices = @transform_0, window_bounds = array<i64: 2, 8, 32>}, {transform_indices = @transform_1, window_bounds = array<i64: 8, 32>}, {transform_indices = @transform_2, window_bounds = array<i64: 2, 8, 32>}]} {
    %c0 = arith.constant 0 : index
    %c0_0 = arith.constant 0 : index
    %c0_1 = arith.constant 0 : index
    %0 = vector.load %arg2[%c0, %c0_0, %c0_1] : memref<2x8x32xf32, #tpu.memory_space<vmem>>, vector<2x8x32xf32>
    %c0_2 = arith.constant 0 : index
    %c0_3 = arith.constant 0 : index
    %1 = vector.load %arg3[%c0_2, %c0_3] : memref<8x32xf32, #tpu.memory_space<vmem>>, vector<8x32xf32>
    %2 = vector.shape_cast %1 : vector<8x32xf32> to vector<1x8x32xf32>
    %3 = vector.broadcast %2 : vector<1x8x32xf32> to vector<2x8x32xf32>
    %4 = arith.addf %0, %3 : vector<2x8x32xf32>
    %c0_4 = arith.constant 0 : index
    %c0_5 = arith.constant 0 : index
    %c0_6 = arith.constant 0 : index
    %5 = vector.load %arg4[%c0_4, %c0_5, %c0_6] : memref<2x8x32xf32, #tpu.memory_space<vmem>>, vector<2x8x32xf32>
    tpu.vector_store %arg4[%c0_4, %c0_5, %c0_6], %4 {strides = array<i32>} : memref<2x8x32xf32, #tpu.memory_space<vmem>>, vector<2x8x32xf32>,
    return
  }
  func.func @transform_0(%arg0: i32, %arg1: i32) -> (i32, i32, i32) {
    %c0_i32 = arith.constant 0 : i32
    %c0_i32_0 = arith.constant 0 : i32
    return %arg0, %arg1, %c0_i32 : i32, i32, i32
  }
  func.func @transform_1(%arg0: i32, %arg1: i32) -> (i32, i32) {
    %c0_i32 = arith.constant 0 : i32
    %c0_i32_0 = arith.constant 0 : i32
    return %arg1, %c0_i32 : i32, i32
  }
  func.func @transform_2(%arg0: i32, %arg1: i32) -> (i32, i32, i32) {
    %c0_i32 = arith.constant 0 : i32
    %c0_i32_0 = arith.constant 0 : i32
    return %arg0, %arg1, %c0_i32 : i32, i32, i32
  }
}

</mosaic_0001>

<llo_original>
// kernel: tpu_custom_call.1
$region0: #{tpu_custom_call.1}
  #allocation0 [shape = 'u32[]', space=smem, size = 0x4, offset = 0x4, fixed_abs, tag = 'smem constant byte address 0x4 - core index']
  #allocation1 [shape = 'u32[72,128]{1,0:T(1,128)}', space=vmem, size = 0x9000, scoped, tag = 'internal scratch']
  %s0 = inlined_call_operand.hbm [shape: f32[2,8,32], index: 0, kind: input, shape index: {}]
  %s1 = inlined_call_operand.hbm [shape: f32[8,32], index: 1, kind: input, shape index: {}]
  %s2 = inlined_call_operand.hbm [shape: f32[2,8,32], index: 2, kind: output, shape index: {}]
  %s3 = sld [smem:[#allocation0]]
  $region26: #{tpu_custom_call.1} parent=0
    _
  %s5 = ssub.s32 1, %s3
  %s6 = scalar_select 0, %s5, %s3
  $region1: #{tpu_custom_call.1} parent=0
    #allocation2 [shape = 'u8[8192]{0}', space=vmem, size = 0x2000, scoped, tag = 'input window, operand 0, single buffered']
    #allocation3 [shape = 's32[1]{0}', space=sflag, size = 0x4, scoped, tag = 'scoped memory for tpu_custom_call.1']
    #allocation4 [shape = 's32[1]{0}', space=sflag, size = 0x4, scoped, tag = 'scoped memory for tpu_custom_call.1']
    #allocation5 [shape = 'u8[4096]{0}', space=vmem, size = 0x1000, scoped, tag = 'input window, operand 1, single buffered']
    #allocation6 [shape = 's32[1]{0}', space=sflag, size = 0x4, scoped, tag = 'scoped memory for tpu_custom_call.1']
    #allocation7 [shape = 'u8[8192]{0}', space=vmem, size = 0x2000, scoped, tag = 'output window, operand 0, single buffered']
    %7 = vsyncpa [#allocation3], 0
    %8 = vsyncpa [#allocation6], 0
    %9 = vsyncpa [#allocation4], 0
    // Predicated region
    $region2: #{tpu_custom_call.1} parent=1 // pred_check
      _
    $region3: #{tpu_custom_call.1} parent=1 // pred_check_branch
      %11 = sbr.rel (0) target = $region5
    $region4: #{tpu_custom_call.1} parent=1 // pred_region
      %13 = vsyncadd [#allocation3], 0
      %s14 = sshll.u32 %s0, 4
      %s15 = int_to_ptr.hbm [resolvable:$true] %s14
      %s16 = sshll.u32 [#allocation2], 4
      %s17 = int_to_ptr.vmem [resolvable:$true] %s16
      %22 = dma.hbm_to_vmem [thread:$0]  %s15, 256, %s17, [#allocation3], 128, 128, 8
    $region5: #{tpu_custom_call.1} parent=1 // pred_fallthru
      _
    // Predicated region
    $region6: #{tpu_custom_call.1} parent=1 // pred_check
      _
    $region7: #{tpu_custom_call.1} parent=1 // pred_check_branch
      %24 = sbr.rel (0) target = $region9
    $region8: #{tpu_custom_call.1} parent=1 // pred_region
      %26 = vsyncadd [#allocation6], 0
      %s28 = sshll.u32 %s1, 4
      %s29 = int_to_ptr.hbm [resolvable:$true] %s28
      %s30 = sshll.u32 [#allocation5], 4
      %s31 = int_to_ptr.vmem [resolvable:$true] %s30
      %33 = dma.hbm_to_vmem [thread:$0]  %s29, 128, %s31, [#allocation6]
    $region9: #{tpu_custom_call.1} parent=1 // pred_fallthru
      _
    // Predicated region
    $region10: #{tpu_custom_call.1} parent=1 // pred_check
      _
    $region11: #{tpu_custom_call.1} parent=1 // pred_check_branch
      %35 = sbr.rel (0) target = $region13
    $region12: #{tpu_custom_call.1} parent=1 // pred_region
      %37 = dma.done [#allocation3], 256
    $region13: #{tpu_custom_call.1} parent=1 // pred_fallthru
      _
    // Predicated region
    $region14: #{tpu_custom_call.1} parent=1 // pred_check
      _
    $region15: #{tpu_custom_call.1} parent=1 // pred_check_branch
      %39 = sbr.rel (0) target = $region17
    $region16: #{tpu_custom_call.1} parent=1 // pred_region
      %41 = dma.done [#allocation6], 128
    $region17: #{tpu_custom_call.1} parent=1 // pred_fallthru
      _
    %v42 = vld [vmem:[#allocation2] sm:$0xff]
    %v43 = vld [vmem:[#allocation2 + $0x8] sm:$0xff]
    %v44 = vld [vmem:[#allocation5] sm:$0xff]
    %v45 = vadd.f32 %v42, %v44
    %v46 = vadd.f32 %v43, %v44
    %vm47 = vcmask 261120
    %48 = vst.msk [vmem:[#allocation7] sm:$0xff] %vm47, %v45
    %49 = vst.msk [vmem:[#allocation7 + $0x8] sm:$0xff] %vm47, %v46
    // Predicated region
    $region18: #{tpu_custom_call.1} parent=1 // pred_check
      _
    $region19: #{tpu_custom_call.1} parent=1 // pred_check_branch
      %51 = sbr.rel (0) target = $region21
    $region20: #{tpu_custom_call.1} parent=1 // pred_region
      %53 = vsyncadd [#allocation4], 0
      %s54 = sshll.u32 [#allocation7], 4
      %s55 = int_to_ptr.vmem [resolvable:$true] %s54
      %s56 = sshll.u32 %s2, 4
      %s57 = int_to_ptr.hbm [resolvable:$true] %s56
      %62 = dma.vmem_to_hbm [thread:$0]  %s55, 256, %s57, [#allocation4], 128, 128, 8
    $region21: #{tpu_custom_call.1} parent=1 // pred_fallthru
      _
    // Predicated region
    $region22: #{tpu_custom_call.1} parent=1 // pred_check
      _
    $region23: #{tpu_custom_call.1} parent=1 // pred_check_branch
      %64 = sbr.rel (0) target = $region25
    $region24: #{tpu_custom_call.1} parent=1 // pred_region
      %66 = dma.done [#allocation4], 256
    $region25: #{tpu_custom_call.1} parent=1 // pred_fallthru
      _
    %67 = vsyncpa [#allocation3], 1
    %68 = vsyncpa [#allocation6], 1
    %69 = vsyncpa [#allocation4], 1

</llo_original>
